<compile_context>
chip_gen: v7x
topology: tpu7x:2x2x1
jax: 0.10.0
libtpu: 0.0.40
codegen_flags: <defaults>
</compile_context>

<pallas_src>
import jax
import jax.numpy as jnp
from jax.experimental import pallas as pl
from jax.experimental.pallas import tpu as pltpu


# ----------------------------------------------------------------------------
# Fused kernel (grid over T timesteps)
# ----------------------------------------------------------------------------
def _fused_rnn_kernel(idx_ref, blob_ref, bias_ref, h0_ref,
                      logits_ref, hout_ref, h_carry):
    """
    idx_ref    : (1, B, 1)      int32 VMEM   token ids for this timestep
    blob_ref   : (R, 4H)        bf16  VMEM   packed weights:
                   rows [0:Vp]            emb_fold = embed @ [Wih_r|Wih_z|Wih_n|0] (layer 0)
                   rows [Vp:Vp+H]         layer-0  [Whh_r|Whh_z|0|Whh_n]
                   rows [.. +2H per l>=1] layer-l  [[Wih_r|Wih_z|Wih_n|0],[Whh_r|Whh_z|0|Whh_n]]
                   rows [last H]          fc_w^T padded to 4H lanes
    bias_ref   : (L+1, 1, 4H)   f32   VMEM   rows 0..L-1: [br|bz|b_ih_n|b_hh_n]; row L: fc bias
    h0_ref     : (L, B, H)      f32   VMEM   initial hidden (read at t == 0 only)
    logits_ref : (1, B, O)      f32   out    per-step logits
    hout_ref   : (L, B, H)      f32   out    final hidden (resident, written each step)
    h_carry    : (L, B, H)      f32   VMEM scratch, hidden carried across grid steps
    """
    L, B, H = hout_ref.shape
    H4 = 4 * H
    Vp = blob_ref.shape[0] - 2 * H * L          # emb rows = R - (H + (L-1)*2H + H)
    O = logits_ref.shape[-1]
    t = pl.program_id(0)

    @pl.when(t == 0)
    def _():
        h_carry[...] = h0_ref[...]

    def gru_blend(g, h_prev):
        # g lanes: [0:H]=r preact, [H:2H]=z preact, [2H:3H]=gi_n, [3H:4H]=gh_n
        r = jax.nn.sigmoid(g[:, 0:H])
        z = jax.nn.sigmoid(g[:, H:2 * H])
        n = jnp.tanh(g[:, 2 * H:3 * H] + r * g[:, 3 * H:4 * H])
        return (1.0 - z) * n + z * h_prev        # all f32

    # ---- one-hot via a single vectorized compare (no gather, no where-chain) ----
    idx = idx_ref[0]                                            # (B, 1) int32
    col = jax.lax.broadcasted_iota(jnp.int32, (B, Vp), 1)
    onehot = (col == idx).astype(jnp.bfloat16)                  # (B, Vp)

    # ---- layer 0: embedding folded into the input-gate matmul ----
    h_prev = h_carry[0]                                         # (B, H) f32
    g0 = (jnp.dot(onehot, blob_ref[0:Vp, :],
                  preferred_element_type=jnp.float32)
          + jnp.dot(h_prev.astype(jnp.bfloat16), blob_ref[Vp:Vp + H, :],
                    preferred_element_type=jnp.float32)
          + bias_ref[0])                                        # (B, 4H) f32
    h_in = gru_blend(g0, h_prev)
    h_carry[0] = h_in

    # ---- layers 1..L-1: one fused (B,2H) x (2H,4H) matmul each ----
    for l in range(1, L):
        h_prev = h_carry[l]
        xh = jnp.concatenate([h_in, h_prev], axis=-1).astype(jnp.bfloat16)
        off = Vp + H + (l - 1) * 2 * H
        g = (jnp.dot(xh, blob_ref[off:off + 2 * H, :],
                     preferred_element_type=jnp.float32)
             + bias_ref[l])
        h_in = gru_blend(g, h_prev)
        h_carry[l] = h_in

    hout_ref[...] = h_carry[...]

    # ---- fc head ----
    off_fc = Vp + H + (L - 1) * 2 * H
    logits_full = (jnp.dot(h_in.astype(jnp.bfloat16),
                           blob_ref[off_fc:off_fc + H, :],
                           preferred_element_type=jnp.float32)
                   + bias_ref[L])                               # (B, 4H)
    logits_ref[0] = logits_full[:, :O]


# ----------------------------------------------------------------------------
# Parameter creation (PyTorch layout) and one-time pre-packing for the kernel
# ----------------------------------------------------------------------------
def init_params(key, input_size, hidden_size, num_layers, output_size, embed_size):
    keys = jax.random.split(key, 3 + 4 * num_layers)
    params = {}
    params["embed"] = jax.random.normal(keys[0], (input_size, embed_size), jnp.float32) * 0.1
    for layer in range(num_layers):
        in_sz = embed_size if layer == 0 else hidden_size
        k = keys[1 + 4 * layer: 1 + 4 * (layer + 1)]
        params[f"w_ih_{layer}"] = jax.random.normal(k[0], (3 * hidden_size, in_sz), jnp.float32) * 0.1
        params[f"w_hh_{layer}"] = jax.random.normal(k[1], (3 * hidden_size, hidden_size), jnp.float32) * 0.1
        params[f"b_ih_{layer}"] = jax.random.normal(k[2], (3 * hidden_size,), jnp.float32) * 0.1
        params[f"b_hh_{layer}"] = jax.random.normal(k[3], (3 * hidden_size,), jnp.float32) * 0.1
    params["fc_w"] = jax.random.normal(keys[-2], (output_size, hidden_size), jnp.float32) * 0.1
    params["fc_b"] = jax.random.normal(keys[-1], (output_size,), jnp.float32) * 0.1
    return params


def pack_params(raw, num_layers, hidden_size, embed_size, input_size, output_size):
    """One-time repack into a single lane-dense bf16 weight blob + f32 bias blob."""
    H, L, E, V, O = hidden_size, num_layers, embed_size, input_size, output_size
    H4 = 4 * H
    assert H % 16 == 0, "hidden_size must be a multiple of 16 for bf16 tile-aligned row slices"
    assert E <= H, "packing assumes embed_size <= hidden_size"
    assert O <= H4, "packing assumes output_size <= 4*hidden_size"
    Vp = ((V + 15) // 16) * 16                                  # tile-align embedding rows

    def ih_block(w_ih_t):   # (in, 3H) -> (in, 4H): [r | z | n | 0]
        i = w_ih_t.shape[0]
        return jnp.concatenate(
            [w_ih_t[:, 0:H], w_ih_t[:, H:2 * H], w_ih_t[:, 2 * H:3 * H],
             jnp.zeros((i, H), jnp.float32)], axis=1)

    def hh_block(w_hh_t):   # (H, 3H) -> (H, 4H): [r | z | 0 | n]
        return jnp.concatenate(
            [w_hh_t[:, 0:H], w_hh_t[:, H:2 * H],
             jnp.zeros((H, H), jnp.float32), w_hh_t[:, 2 * H:3 * H]], axis=1)

    rows = []
    # layer 0: fold embedding into the input-gate weight:  (V, 4H) = embed @ [Wih_r|Wih_z|Wih_n|0]
    emb_fold = raw["embed"] @ ih_block(raw["w_ih_0"].T)         # (V, 4H) f32
    emb_fold = jnp.zeros((Vp, H4), jnp.float32).at[:V].set(emb_fold)
    rows.append(emb_fold)
    rows.append(hh_block(raw["w_hh_0"].T))                      # (H, 4H)
    for l in range(1, L):
        rows.append(ih_block(raw[f"w_ih_{l}"].T))               # (H, 4H)
        rows.append(hh_block(raw[f"w_hh_{l}"].T))               # (H, 4H)
    fc_blk = jnp.zeros((H, H4), jnp.float32).at[:, :O].set(raw["fc_w"].T)
    rows.append(fc_blk)                                         # (H, 4H)
    blob = jnp.concatenate(rows, axis=0).astype(jnp.bfloat16)   # (Vp + 2HL, 4H)

    bias_rows = []
    for l in range(L):
        b_ih, b_hh = raw[f"b_ih_{l}"], raw[f"b_hh_{l}"]
        bias_rows.append(jnp.concatenate(
            [b_ih[0:H] + b_hh[0:H], b_ih[H:2 * H] + b_hh[H:2 * H],
             b_ih[2 * H:3 * H], b_hh[2 * H:3 * H]]))
    bias_rows.append(jnp.zeros((H4,), jnp.float32).at[:O].set(raw["fc_b"]))
    bias = jnp.stack(bias_rows).reshape(L + 1, 1, H4).astype(jnp.float32)

    return {"blob": blob, "bias": bias}


# ----------------------------------------------------------------------------
# Forward pass: one fused pallas_call over T timesteps (T=1 == module forward)
# ----------------------------------------------------------------------------
def rnn_forward_seq(packed, x_seq, hidden, *, output_size):
    blob, bias = packed["blob"], packed["bias"]
    L, B, H = hidden.shape
    T = x_seq.shape[0]
    O = output_size
    H4 = 4 * H
    R = blob.shape[0]

    idx = x_seq.reshape(T, B, 1).astype(jnp.int32)

    grid_spec = pltpu.PrefetchScalarGridSpec(
        num_scalar_prefetch=0,
        grid=(T,),
        in_specs=[
            pl.BlockSpec((1, B, 1), lambda t: (t, 0, 0)),        # idx: per-step
            pl.BlockSpec((R, H4), lambda t: (0, 0)),             # weights: resident
            pl.BlockSpec((L + 1, 1, H4), lambda t: (0, 0, 0)),   # biases: resident
            pl.BlockSpec((L, B, H), lambda t: (0, 0, 0)),        # h0: resident
        ],
        out_specs=[
            pl.BlockSpec((1, B, O), lambda t: (t, 0, 0)),        # per-step logits
            pl.BlockSpec((L, B, H), lambda t: (0, 0, 0)),        # final hidden (resident)
        ],
        scratch_shapes=[pltpu.VMEM((L, B, H), jnp.float32)],     # hidden carry
    )

    logits, hidden_out = pl.pallas_call(
        _fused_rnn_kernel,
        out_shape=(jax.ShapeDtypeStruct((T, B, O), jnp.float32),
                   jax.ShapeDtypeStruct((L, B, H), jnp.float32)),
        grid_spec=grid_spec,
        input_output_aliases={3: 1},                             # hidden in -> hidden out
        compiler_params=pltpu.CompilerParams(
            dimension_semantics=("arbitrary",)),                 # sequential hidden carry
    )(idx, blob, bias, hidden.astype(jnp.float32))
    return logits, hidden_out


def rnn_forward(packed, x_idx, hidden, *, output_size):
    """Single-token forward, matching the PyTorch module's forward(x, hidden)."""
    logits, hidden_out = rnn_forward_seq(packed, x_idx.reshape(1, -1), hidden,
                                         output_size=output_size)
    return logits[0], hidden_out


# ----------------------------------------------------------------------------
# Pure-JAX reference (f32) matching PyTorch GRU/Linear semantics
# ----------------------------------------------------------------------------
def rnn_reference(raw, x_idx, hidden, num_layers, hidden_size):
    H = hidden_size
    out = raw["embed"][x_idx]
    new_h = []
    for l in range(num_layers):
        h = hidden[l]
        gi = out @ raw[f"w_ih_{l}"].T + raw[f"b_ih_{l}"]
        gh = h @ raw[f"w_hh_{l}"].T + raw[f"b_hh_{l}"]
        r = jax.nn.sigmoid(gi[:, 0:H] + gh[:, 0:H])
        z = jax.nn.sigmoid(gi[:, H:2 * H] + gh[:, H:2 * H])
        n = jnp.tanh(gi[:, 2 * H:] + r * gh[:, 2 * H:])
        h_new = (1.0 - z) * n + z * h
        new_h.append(h_new)
        out = h_new
    logits = out @ raw["fc_w"].T + raw["fc_b"]
    return logits, jnp.stack(new_h, axis=0)


def rnn_reference_seq(raw, x_seq, hidden, num_layers, hidden_size):
    logits_all, h = [], hidden
    for t in range(x_seq.shape[0]):
        logits, h = rnn_reference(raw, x_seq[t], h, num_layers, hidden_size)
        logits_all.append(logits)
    return jnp.stack(logits_all, axis=0), h


if __name__ == "__main__":
    # Small shapes consistent with the module.
    input_size = 32      # vocab size
    hidden_size = 32
    num_layers = 2
    output_size = 32     # vocab size again
    embed_size = 30
    batch = 2
    seq_len = 6          # timesteps per amortized call

    key = jax.random.PRNGKey(0)
    pkey, xkey, skey = jax.random.split(key, 3)
    raw = init_params(pkey, input_size, hidden_size, num_layers, output_size, embed_size)
    packed = pack_params(raw, num_layers, hidden_size, embed_size, input_size, output_size)

    hidden0 = jnp.zeros((num_layers, batch, hidden_size), jnp.float32)       # init_hidden

    # --- single-token forward (exact module semantics) ---
    x = jax.random.randint(xkey, (batch,), 0, input_size, dtype=jnp.int32)
    fwd = jax.jit(rnn_forward, static_argnames=("output_size",))
    logits, hidden1 = fwd(packed, x, hidden0, output_size=output_size)
    jax.block_until_ready((logits, hidden1))

    assert logits.shape == (batch, output_size)
    assert hidden1.shape == (num_layers, batch, hidden_size)

    ref_logits, ref_hidden = rnn_reference(raw, x, hidden0, num_layers, hidden_size)
    assert bool(jnp.allclose(logits, ref_logits, atol=2e-2, rtol=2e-2))
    assert bool(jnp.allclose(hidden1, ref_hidden, atol=2e-2, rtol=2e-2))

    # --- amortized multi-step forward (grid over T, weights resident) ---
    x_seq = jax.random.randint(skey, (seq_len, batch), 0, input_size, dtype=jnp.int32)
    fwd_seq = jax.jit(rnn_forward_seq, static_argnames=("output_size",))
    logits_seq, hidden_T = fwd_seq(packed, x_seq, hidden0, output_size=output_size)
    jax.block_until_ready((logits_seq, hidden_T))

    assert logits_seq.shape == (seq_len, batch, output_size)
    assert hidden_T.shape == (num_layers, batch, hidden_size)

    ref_logits_seq, ref_hidden_T = rnn_reference_seq(raw, x_seq, hidden0, num_layers, hidden_size)
    assert bool(jnp.allclose(logits_seq, ref_logits_seq, atol=2e-2, rtol=2e-2))
    assert bool(jnp.allclose(hidden_T, ref_hidden_T, atol=2e-2, rtol=2e-2))

    print("KERNEL_OK")
</pallas_src>

<mosaic_0001>
module attributes {stable_mosaic.version = 11 : i64} {
  func.func @_fused_rnn_kernel(%arg0: i32, %arg1: memref<1x2x1xi32, #tpu.memory_space<vmem>>, %arg2: memref<160x128xbf16, #tpu.memory_space<vmem>>, %arg3: memref<3x1x128xf32, #tpu.memory_space<vmem>>, %arg4: memref<2x2x32xf32, #tpu.memory_space<vmem>>, %arg5: memref<1x2x32xf32, #tpu.memory_space<vmem>>, %arg6: memref<2x2x32xf32, #tpu.memory_space<vmem>>, %arg7: memref<2x2x32xf32, #tpu.memory_space<vmem>>) attributes {dimension_semantics = [#tpu.dimension_semantics<arbitrary>], iteration_bounds = array<i64: 1>, scalar_prefetch = 0 : i64, scratch_operands = 1 : i64, tpu.core_type = #tpu.core_type<tc>, window_params = [{transform_indices = @transform_0, window_bounds = array<i64: 1, 2, 1>}, {pipeline_mode = #tpu.pipeline_mode<synchronous>, transform_indices = @transform_1, window_bounds = array<i64: 160, 128>}, {pipeline_mode = #tpu.pipeline_mode<synchronous>, transform_indices = @transform_2, window_bounds = array<i64: 3, 1, 128>}, {pipeline_mode = #tpu.pipeline_mode<synchronous>, transform_indices = @transform_3, window_bounds = array<i64: 2, 2, 32>}, {transform_indices = @transform_4, window_bounds = array<i64: 1, 2, 32>}, {pipeline_mode = #tpu.pipeline_mode<synchronous>, transform_indices = @transform_5, window_bounds = array<i64: 2, 2, 32>}]} {
    %c0_i32 = arith.constant 0 : i32
    %0 = arith.cmpi eq, %arg0, %c0_i32 : i32
    %1 = arith.extui %0 : i1 to i32
    %c0_i32_0 = arith.constant 0 : i32
    %2 = arith.cmpi ne, %1, %c0_i32_0 : i32
    scf.if %2 {
      %c0_45 = arith.constant 0 : index
      %c0_46 = arith.constant 0 : index
      %c0_47 = arith.constant 0 : index
      %96 = vector.load %arg4[%c0_45, %c0_46, %c0_47] : memref<2x2x32xf32, #tpu.memory_space<vmem>>, vector<2x2x32xf32>
      %c0_48 = arith.constant 0 : index
      %c0_49 = arith.constant 0 : index
      %c0_50 = arith.constant 0 : index
      %97 = vector.load %arg7[%c0_48, %c0_49, %c0_50] : memref<2x2x32xf32, #tpu.memory_space<vmem>>, vector<2x2x32xf32>
      tpu.vector_store %arg7[%c0_48, %c0_49, %c0_50], %96 {strides = array<i32>} : memref<2x2x32xf32, #tpu.memory_space<vmem>>, vector<2x2x32xf32>,
    } else {
    }
    %c0 = arith.constant 0 : index
    %c0_1 = arith.constant 0 : index
    %c0_2 = arith.constant 0 : index
    %3 = vector.load %arg1[%c0, %c0_1, %c0_2] : memref<1x2x1xi32, #tpu.memory_space<vmem>>, vector<1x2x1xi32>
    %4 = vector.shape_cast %3 : vector<1x2x1xi32> to vector<2x1xi32>
    %5 = tpu.iota {dimensions = array<i32: 1>} : vector<2x32xi32>
    %6 = vector.broadcast %4 : vector<2x1xi32> to vector<2x32xi32>
    %7 = arith.cmpi eq, %5, %6 : vector<2x32xi32>
    %8 = arith.extui %7 : vector<2x32xi1> to vector<2x32xi32>
    %9 = arith.sitofp %8 : vector<2x32xi32> to vector<2x32xf32>
    %10 = arith.truncf %9 : vector<2x32xf32> to vector<2x32xbf16>
    %c0_3 = arith.constant 0 : index
    %c0_4 = arith.constant 0 : index
    %c0_5 = arith.constant 0 : index
    %11 = vector.load %arg7[%c0_3, %c0_4, %c0_5] : memref<2x2x32xf32, #tpu.memory_space<vmem>>, vector<1x2x32xf32>
    %12 = vector.shape_cast %11 : vector<1x2x32xf32> to vector<2x32xf32>
    %c0_6 = arith.constant 0 : index
    %c0_7 = arith.constant 0 : index
    %13 = vector.load %arg2[%c0_6, %c0_7] : memref<160x128xbf16, #tpu.memory_space<vmem>>, vector<32x128xbf16>
    %cst = arith.constant dense<0.000000e+00> : vector<2x128xf32>
    %14 = tpu.matmul %10, %13, %cst {dimension_numbers = #tpu.dot_dimension_numbers<[1], [0], [0], [1], [0, 0, 1, 1], [], []>} : vector<2x32xbf16>, vector<32x128xbf16>, vector<2x128xf32> -> vector<2x128xf32>
    %15 = arith.truncf %12 : vector<2x32xf32> to vector<2x32xbf16>
    %c32 = arith.constant 32 : index
    %c0_8 = arith.constant 0 : index
    %16 = vector.load %arg2[%c32, %c0_8] : memref<160x128xbf16, #tpu.memory_space<vmem>>, vector<32x128xbf16>
    %cst_9 = arith.constant dense<0.000000e+00> : vector<2x128xf32>
    %17 = tpu.matmul %15, %16, %cst_9 {dimension_numbers = #tpu.dot_dimension_numbers<[1], [0], [0], [1], [0, 0, 1, 1], [], []>} : vector<2x32xbf16>, vector<32x128xbf16>, vector<2x128xf32> -> vector<2x128xf32>
    %18 = arith.addf %14, %17 : vector<2x128xf32>
    %c0_10 = arith.constant 0 : index
    %c0_11 = arith.constant 0 : index
    %c0_12 = arith.constant 0 : index
    %19 = vector.load %arg3[%c0_10, %c0_11, %c0_12] : memref<3x1x128xf32, #tpu.memory_space<vmem>>, vector<1x1x128xf32>
    %20 = vector.shape_cast %19 : vector<1x1x128xf32> to vector<1x128xf32>
    %21 = vector.broadcast %20 : vector<1x128xf32> to vector<2x128xf32>
    %22 = arith.addf %18, %21 : vector<2x128xf32>
    %23 = vector.extract_strided_slice %22 {offsets = [0, 0], sizes = [2, 32], strides = [1, 1]} : vector<2x128xf32> to vector<2x32xf32>
    %24 = arith.negf %23 : vector<2x32xf32>
    %25 = math.exp %24 : vector<2x32xf32>
    %cst_13 = arith.constant 1.000000e+00 : f32
    %26 = vector.broadcast %cst_13 : f32 to vector<2x32xf32>
    %27 = arith.addf %26, %25 : vector<2x32xf32>
    %28 = arith.divf %26, %27 : vector<2x32xf32>
    %29 = vector.extract_strided_slice %22 {offsets = [0, 32], sizes = [2, 32], strides = [1, 1]} : vector<2x128xf32> to vector<2x32xf32>
    %30 = arith.negf %29 : vector<2x32xf32>
    %31 = math.exp %30 : vector<2x32xf32>
    %cst_14 = arith.constant 1.000000e+00 : f32
    %32 = vector.broadcast %cst_14 : f32 to vector<2x32xf32>
    %33 = arith.addf %32, %31 : vector<2x32xf32>
    %34 = arith.divf %32, %33 : vector<2x32xf32>
    %35 = vector.extract_strided_slice %22 {offsets = [0, 64], sizes = [2, 32], strides = [1, 1]} : vector<2x128xf32> to vector<2x32xf32>
    %36 = vector.extract_strided_slice %22 {offsets = [0, 96], sizes = [2, 32], strides = [1, 1]} : vector<2x128xf32> to vector<2x32xf32>
    %37 = arith.mulf %28, %36 : vector<2x32xf32>
    %38 = arith.addf %35, %37 : vector<2x32xf32>
    %39 = math.tanh %38 : vector<2x32xf32>
    %cst_15 = arith.constant 1.000000e+00 : f32
    %40 = vector.broadcast %cst_15 : f32 to vector<2x32xf32>
    %41 = arith.subf %40, %34 : vector<2x32xf32>
    %42 = arith.mulf %41, %39 : vector<2x32xf32>
    %43 = arith.mulf %34, %12 : vector<2x32xf32>
    %44 = arith.addf %42, %43 : vector<2x32xf32>
    %c0_16 = arith.constant 0 : index
    %c0_17 = arith.constant 0 : index
    %c0_18 = arith.constant 0 : index
    %45 = vector.load %arg7[%c0_16, %c0_17, %c0_18] : memref<2x2x32xf32, #tpu.memory_space<vmem>>, vector<1x2x32xf32>
    %46 = vector.shape_cast %45 : vector<1x2x32xf32> to vector<2x32xf32>
    %47 = vector.shape_cast %44 : vector<2x32xf32> to vector<1x2x32xf32>
    tpu.vector_store %arg7[%c0_16, %c0_17, %c0_18], %47 {strides = array<i32>} : memref<2x2x32xf32, #tpu.memory_space<vmem>>, vector<1x2x32xf32>,
    %c1 = arith.constant 1 : index
    %c0_19 = arith.constant 0 : index
    %c0_20 = arith.constant 0 : index
    %48 = vector.load %arg7[%c1, %c0_19, %c0_20] : memref<2x2x32xf32, #tpu.memory_space<vmem>>, vector<1x2x32xf32>
    %49 = vector.shape_cast %48 : vector<1x2x32xf32> to vector<2x32xf32>
    %50 = tpu.concatenate %44, %49 in 1 : vector<2x32xf32>, vector<2x32xf32> -> vector<2x64xf32>
    %51 = arith.truncf %50 : vector<2x64xf32> to vector<2x64xbf16>
    %c64 = arith.constant 64 : index
    %c0_21 = arith.constant 0 : index
    %52 = vector.load %arg2[%c64, %c0_21] : memref<160x128xbf16, #tpu.memory_space<vmem>>, vector<64x128xbf16>
    %cst_22 = arith.constant dense<0.000000e+00> : vector<2x128xf32>
    %53 = tpu.matmul %51, %52, %cst_22 {dimension_numbers = #tpu.dot_dimension_numbers<[1], [0], [0], [1], [0, 0, 1, 1], [], []>} : vector<2x64xbf16>, vector<64x128xbf16>, vector<2x128xf32> -> vector<2x128xf32>
    %c1_23 = arith.constant 1 : index
    %c0_24 = arith.constant 0 : index
    %c0_25 = arith.constant 0 : index
    %54 = vector.load %arg3[%c1_23, %c0_24, %c0_25] : memref<3x1x128xf32, #tpu.memory_space<vmem>>, vector<1x1x128xf32>
    %55 = vector.shape_cast %54 : vector<1x1x128xf32> to vector<1x128xf32>
    %56 = vector.broadcast %55 : vector<1x128xf32> to vector<2x128xf32>
    %57 = arith.addf %53, %56 : vector<2x128xf32>
    %58 = vector.extract_strided_slice %57 {offsets = [0, 0], sizes = [2, 32], strides = [1, 1]} : vector<2x128xf32> to vector<2x32xf32>
    %59 = arith.negf %58 : vector<2x32xf32>
    %60 = math.exp %59 : vector<2x32xf32>
    %cst_26 = arith.constant 1.000000e+00 : f32
    %61 = vector.broadcast %cst_26 : f32 to vector<2x32xf32>
    %62 = arith.addf %61, %60 : vector<2x32xf32>
    %63 = arith.divf %61, %62 : vector<2x32xf32>
    %64 = vector.extract_strided_slice %57 {offsets = [0, 32], sizes = [2, 32], strides = [1, 1]} : vector<2x128xf32> to vector<2x32xf32>
    %65 = arith.negf %64 : vector<2x32xf32>
    %66 = math.exp %65 : vector<2x32xf32>
    %cst_27 = arith.constant 1.000000e+00 : f32
    %67 = vector.broadcast %cst_27 : f32 to vector<2x32xf32>
    %68 = arith.addf %67, %66 : vector<2x32xf32>
    %69 = arith.divf %67, %68 : vector<2x32xf32>
    %70 = vector.extract_strided_slice %57 {offsets = [0, 64], sizes = [2, 32], strides = [1, 1]} : vector<2x128xf32> to vector<2x32xf32>
    %71 = vector.extract_strided_slice %57 {offsets = [0, 96], sizes = [2, 32], strides = [1, 1]} : vector<2x128xf32> to vector<2x32xf32>
    %72 = arith.mulf %63, %71 : vector<2x32xf32>
    %73 = arith.addf %70, %72 : vector<2x32xf32>
    %74 = math.tanh %73 : vector<2x32xf32>
    %cst_28 = arith.constant 1.000000e+00 : f32
    %75 = vector.broadcast %cst_28 : f32 to vector<2x32xf32>
    %76 = arith.subf %75, %69 : vector<2x32xf32>
    %77 = arith.mulf %76, %74 : vector<2x32xf32>
    %78 = arith.mulf %69, %49 : vector<2x32xf32>
    %79 = arith.addf %77, %78 : vector<2x32xf32>
    %c1_29 = arith.constant 1 : index
    %c0_30 = arith.constant 0 : index
    %c0_31 = arith.constant 0 : index
    %80 = vector.load %arg7[%c1_29, %c0_30, %c0_31] : memref<2x2x32xf32, #tpu.memory_space<vmem>>, vector<1x2x32xf32>
    %81 = vector.shape_cast %80 : vector<1x2x32xf32> to vector<2x32xf32>
    %82 = vector.shape_cast %79 : vector<2x32xf32> to vector<1x2x32xf32>
    tpu.vector_store %arg7[%c1_29, %c0_30, %c0_31], %82 {strides = array<i32>} : memref<2x2x32xf32, #tpu.memory_space<vmem>>, vector<1x2x32xf32>,
    %c0_32 = arith.constant 0 : index
    %c0_33 = arith.constant 0 : index
    %c0_34 = arith.constant 0 : index
    %83 = vector.load %arg7[%c0_32, %c0_33, %c0_34] : memref<2x2x32xf32, #tpu.memory_space<vmem>>, vector<2x2x32xf32>
    %c0_35 = arith.constant 0 : index
    %c0_36 = arith.constant 0 : index
    %c0_37 = arith.constant 0 : index
    %84 = vector.load %arg6[%c0_35, %c0_36, %c0_37] : memref<2x2x32xf32, #tpu.memory_space<vmem>>, vector<2x2x32xf32>
    tpu.vector_store %arg6[%c0_35, %c0_36, %c0_37], %83 {strides = array<i32>} : memref<2x2x32xf32, #tpu.memory_space<vmem>>, vector<2x2x32xf32>,
    %85 = arith.truncf %79 : vector<2x32xf32> to vector<2x32xbf16>
    %c128 = arith.constant 128 : index
    %c0_38 = arith.constant 0 : index
    %86 = vector.load %arg2[%c128, %c0_38] : memref<160x128xbf16, #tpu.memory_space<vmem>>, vector<32x128xbf16>
    %cst_39 = arith.constant dense<0.000000e+00> : vector<2x128xf32>
    %87 = tpu.matmul %85, %86, %cst_39 {dimension_numbers = #tpu.dot_dimension_numbers<[1], [0], [0], [1], [0, 0, 1, 1], [], []>} : vector<2x32xbf16>, vector<32x128xbf16>, vector<2x128xf32> -> vector<2x128xf32>
    %c2 = arith.constant 2 : index
    %c0_40 = arith.constant 0 : index
    %c0_41 = arith.constant 0 : index
    %88 = vector.load %arg3[%c2, %c0_40, %c0_41] : memref<3x1x128xf32, #tpu.memory_space<vmem>>, vector<1x1x128xf32>
    %89 = vector.shape_cast %88 : vector<1x1x128xf32> to vector<1x128xf32>
    %90 = vector.broadcast %89 : vector<1x128xf32> to vector<2x128xf32>
    %91 = arith.addf %87, %90 : vector<2x128xf32>
    %92 = vector.extract_strided_slice %91 {offsets = [0, 0], sizes = [2, 32], strides = [1, 1]} : vector<2x128xf32> to vector<2x32xf32>
    %c0_42 = arith.constant 0 : index
    %c0_43 = arith.constant 0 : index
    %c0_44 = arith.constant 0 : index
    %93 = vector.load %arg5[%c0_42, %c0_43, %c0_44] : memref<1x2x32xf32, #tpu.memory_space<vmem>>, vector<1x2x32xf32>
    %94 = vector.shape_cast %93 : vector<1x2x32xf32> to vector<2x32xf32>
    %95 = vector.shape_cast %92 : vector<2x32xf32> to vector<1x2x32xf32>
    tpu.vector_store %arg5[%c0_42, %c0_43, %c0_44], %95 {strides = array<i32>} : memref<1x2x32xf32, #tpu.memory_space<vmem>>, vector<1x2x32xf32>,
    return
  }
  func.func @transform_0(%arg0: i32) -> (i32, i32, i32) {
    %c0_i32 = arith.constant 0 : i32
    %c0_i32_0 = arith.constant 0 : i32
    %c0_i32_1 = arith.constant 0 : i32
    return %arg0, %c0_i32, %c0_i32_0 : i32, i32, i32
  }
  func.func @transform_1(%arg0: i32) -> (i32, i32) {
    %c0_i32 = arith.constant 0 : i32
    %c0_i32_0 = arith.constant 0 : i32
    %c0_i32_1 = arith.constant 0 : i32
    return %c0_i32, %c0_i32_0 : i32, i32
  }
  func.func @transform_2(%arg0: i32) -> (i32, i32, i32) {
    %c0_i32 = arith.constant 0 : i32
    %c0_i32_0 = arith.constant 0 : i32
    %c0_i32_1 = arith.constant 0 : i32
    %c0_i32_2 = arith.constant 0 : i32
    return %c0_i32, %c0_i32_0, %c0_i32_1 : i32, i32, i32
  }
  func.func @transform_3(%arg0: i32) -> (i32, i32, i32) {
    %c0_i32 = arith.constant 0 : i32
    %c0_i32_0 = arith.constant 0 : i32
    %c0_i32_1 = arith.constant 0 : i32
    %c0_i32_2 = arith.constant 0 : i32
    return %c0_i32, %c0_i32_0, %c0_i32_1 : i32, i32, i32
  }
  func.func @transform_4(%arg0: i32) -> (i32, i32, i32) {
    %c0_i32 = arith.constant 0 : i32
    %c0_i32_0 = arith.constant 0 : i32
    %c0_i32_1 = arith.constant 0 : i32
    return %arg0, %c0_i32, %c0_i32_0 : i32, i32, i32
  }
  func.func @transform_5(%arg0: i32) -> (i32, i32, i32) {
    %c0_i32 = arith.constant 0 : i32
    %c0_i32_0 = arith.constant 0 : i32
    %c0_i32_1 = arith.constant 0 : i32
    %c0_i32_2 = arith.constant 0 : i32
    return %c0_i32, %c0_i32_0, %c0_i32_1 : i32, i32, i32
  }
}

</mosaic_0001>

<llo_original>
// kernel: rnn_forward.1
$region0: #{rnn_forward.1}
  #allocation0 [shape = 'u32[]', space=smem, size = 0x4, offset = 0x4, fixed_abs, tag = 'smem constant byte address 0x4 - core index']
  #allocation1 [shape = 'u32[144,128]{1,0:T(1,128)}', space=vmem, size = 0x12000, scoped, tag = 'internal scratch']
  #allocation2 [shape = 'f32[2,2,32]{2,1,0:T(2,128)}', space=vmem, size = 0x800, scoped, tag = 'scratch operand']
  %s0 = inlined_call_operand.vmem [shape: s32[1,2,1], index: 0, kind: input, shape index: {}]
  %s1 = inlined_call_operand.hbm [shape: bf16[160,128], index: 1, kind: input, shape index: {}]
  %s2 = inlined_call_operand.vmem [shape: f32[3,1,128], index: 2, kind: input, shape index: {}]
  %s3 = inlined_call_operand.vmem [shape: f32[2,2,32], index: 3, kind: input, shape index: {}, may-alias: {3,5}]
  %s4 = inlined_call_operand.hbm [shape: f32[1,2,32], index: 4, kind: output, shape index: {0}]
  %s5 = inlined_call_operand.vmem [shape: f32[2,2,32], index: 5, kind: output, shape index: {1}, may-alias: {3,5}]
  %6 = xla_tuple %s4, %s5
  %s7 = sld [smem:[#allocation0]]
  $region42: #{rnn_forward.1} parent=0
    _
  %s9 = ssub.s32 1, %s7
  %s10 = scalar_select 0, %s9, %s7
  $region1: #{rnn_forward.1} parent=0
    #allocation3 [shape = 'u8[40960]{0}', space=vmem, size = 0xa000, scoped, tag = 'input window, operand 1, single buffered']
    #allocation4 [shape = 's32[1]{0}', space=sflag, size = 0x4, scoped, tag = 'scoped memory for rnn_forward.1']
    #allocation5 [shape = 's32[1]{0}', space=sflag, size = 0x4, scoped, tag = 'scoped memory for rnn_forward.1']
    #allocation6 [shape = 'u8[1024]{0}', space=vmem, size = 0x400, scoped, tag = 'output window, operand 0, single buffered']
    %11 = vsyncpa [#allocation4], 0
    %12 = vsyncpa [#allocation5], 0
    // Predicated region
    $region2: #{rnn_forward.1} parent=1 // pred_check
      _
    $region3: #{rnn_forward.1} parent=1 // pred_check_branch
      %14 = sbr.rel (0) target = $region5
    $region4: #{rnn_forward.1} parent=1 // pred_region
      _
    $region5: #{rnn_forward.1} parent=1 // pred_fallthru
      _
    // Predicated region
    $region6: #{rnn_forward.1} parent=1 // pred_check
      _
    $region7: #{rnn_forward.1} parent=1 // pred_check_branch
      %16 = sbr.rel (0) target = $region9
    $region8: #{rnn_forward.1} parent=1 // pred_region
      %s18 = ssub.s32 1280, 1280
      %19 = vsyncadd [#allocation4], %s18
      %s20 = sshll.u32 [#allocation3], 4
      %s21 = int_to_ptr.vmem [resolvable:$true] %s20
      %26 = dma.hbm_to_vmem [thread:$0]  %s1, 1280, %s21, [#allocation4], 64, 64, 4
    $region9: #{rnn_forward.1} parent=1 // pred_fallthru
      _
    // Predicated region
    $region10: #{rnn_forward.1} parent=1 // pred_check
      _
    $region11: #{rnn_forward.1} parent=1 // pred_check_branch
      %28 = sbr.rel (0) target = $region13
    $region12: #{rnn_forward.1} parent=1 // pred_region
      _
    $region13: #{rnn_forward.1} parent=1 // pred_fallthru
      _
    // Predicated region
    $region14: #{rnn_forward.1} parent=1 // pred_check
      _
    $region15: #{rnn_forward.1} parent=1 // pred_check_branch
      %30 = sbr.rel (0) target = $region17
    $region16: #{rnn_forward.1} parent=1 // pred_region
      _
    $region17: #{rnn_forward.1} parent=1 // pred_fallthru
      _
    // Predicated region
    $region18: #{rnn_forward.1} parent=1 // pred_check
      _
    $region19: #{rnn_forward.1} parent=1 // pred_check_branch
      %32 = sbr.rel (0) target = $region21
    $region20: #{rnn_forward.1} parent=1 // pred_region
      %33 = dma.done [#allocation4], 1280
    $region21: #{rnn_forward.1} parent=1 // pred_fallthru
      _
    %p35 = scmp.eq.s32.totalorder 0, 0
    // Predicated region
    $region22: #{rnn_forward.1} parent=1 // pred_check
      %p36 = pneg %p35
    $region23: #{rnn_forward.1} parent=1 // pred_check_branch
      %38 = sbr.rel (%p36) target = $region25
    $region24: #{rnn_forward.1} parent=1 // pred_region
      %v39 = vld [vmem:[%s3] sm:$0x3]
      %v40 = vld [vmem:[%s3 + $0x2] sm:$0x3]
      %vm41 = vcmask 254976
      %42 = vst.msk [vmem:[#allocation2] sm:$0x3] %vm41, %v39
      %43 = vst.msk [vmem:[#allocation2 + $0x2] sm:$0x3] %vm41, %v40
    $region25: #{rnn_forward.1} parent=1 // pred_fallthru
      _
    %v44 = vld [vmem:[%s0] sm:$0x3]
    %v45 = vlaneseq
    %v46 = vand.u32 %v45, 127
    %47 = vset.pattern.permute.xlu0 0
    %48 = vperm.xlu0 %47, %v44
    %v49 = vpop.permute.xlu0 %48
    %vm50 = vcmp.eq.s32.totalorder %v46, %v49
    %v51 = vsel %vm50, 1, 0
    %v52 = vcvt.s32.f32 %v51
    %v53 = vpack.c.bf16 %v52, %v52
    %v54 = vld [vmem:[#allocation2] sm:$0x3]
    %v55 = vld [vmem:[#allocation3] sm:$0xf]
    %v56 = vld [vmem:[#allocation3 + $0x4] sm:$0xf]
    %v57 = vld [vmem:[#allocation3 + $0x8] sm:$0xf]
    %v58 = vld [vmem:[#allocation3 + $0xc] sm:$0xf]
    %v59 = vpack.c.bf16 %v54, %v54
    %v60 = vld [vmem:[#allocation3 + $0x10] sm:$0xf]
    %v61 = vld [vmem:[#allocation3 + $0x14] sm:$0xf]
    %v62 = vld [vmem:[#allocation3 + $0x18] sm:$0xf]
    %v63 = vld [vmem:[#allocation3 + $0x1c] sm:$0xf]
    %v68 = vunpack.c.l.b16 %v60
    %v69 = vunpack.c.l.b16 %v61
    %v70 = vunpack.c.l.b16 %v62
    %v71 = vunpack.c.l.b16 %v63
    %v72 = vpack.c.b16 %v69, %v68
    %v73 = vpack.c.b16 %v71, %v70
    %vm76 = vcmask 261120
    %v78 = vsel %vm76, %v59, 0
    %80 = vmatprep.subr.bf16.mxu0 0
    %81 = vmatpush1.bf16.msra.mxu0 %v72
    %82 = vmatprep.subr.bf16.mxu0 0
    %83 = vmatpush1.bf16.msra.mxu0 %v73
    %84 = vmatprep.subr.bf16.mxu0 0
    %85 = vmatpush1.bf16.msra.mxu0 0
    %86 = vmatprep.subr.bf16.mxu0 0
    %87 = vmatpush1.bf16.msra.mxu0 0
    %88 = vmatprep.subr.bf16.mxu0 0
    %89 = vmatpush1.bf16.msra.mxu0 0
    %90 = vmatprep.subr.bf16.mxu0 0
    %91 = vmatpush1.bf16.msra.mxu0 0
    %92 = vmatprep.subr.bf16.mxu0 0
    %93 = vmatpush1.bf16.msra.mxu0 0
    %94 = vmatprep.subr.bf16.mxu0 0
    %95 = vmatpush1.bf16.msra.mxu0 0
    %96 = vmatprep.subr.bf16.mxu0 0
    %97 = vmatpush1.bf16.msra.mxu0 0
    %98 = vmatprep.subr.bf16.mxu0 0
    %99 = vmatpush1.bf16.msra.mxu0 0
    %100 = vmatprep.subr.bf16.mxu0 0
    %101 = vmatpush1.bf16.msra.mxu0 0
    %102 = vmatprep.subr.bf16.mxu0 0
    %103 = vmatpush1.bf16.msra.mxu0 0
    %104 = vmatprep.subr.bf16.mxu0 0
    %105 = vmatpush1.bf16.msra.mxu0 0
    %106 = vmatprep.subr.bf16.mxu0 0
    %107 = vmatpush1.bf16.msra.mxu0 0
    %108 = vmatprep.subr.bf16.mxu0 0
    %109 = vmatpush1.bf16.msra.mxu0 0
    %110 = vmatprep.subr.bf16.mxu0 0
    %111 = vmatpush1.bf16.msra.mxu0 0
    %112 = vmatprep.mubr.bf16.mxu0 0
    %113 = vmatmul.mubr.bf16.gmra.mrb[0].mxu0 %v78
    %v114 = vpop.f32.mrb[0].mxu0
    %v115 = vadd.f32 0.0, %v114
    %v116 = vpop.f32.mrb[0].mxu0
    %v117 = vpop.f32.mrb[0].mxu0
    %v118 = vpop.f32.mrb[0].mxu0
    %119 = vdwg.mxu0
    %v124 = vunpack.c.l.b16 %v55
    %v125 = vunpack.c.l.b16 %v56
    %v126 = vunpack.c.l.b16 %v57
    %v127 = vunpack.c.l.b16 %v58
    %v128 = vpack.c.b16 %v125, %v124
    %v129 = vpack.c.b16 %v127, %v126
    %v133 = vsel %vm76, %v53, 0
    %135 = vmatprep.subr.bf16.mxu0 0
    %136 = vmatpush1.bf16.msra.mxu0 %v128
    %137 = vmatprep.subr.bf16.mxu0 0
    %138 = vmatpush1.bf16.msra.mxu0 %v129
    %139 = vmatprep.subr.bf16.mxu0 0
    %140 = vmatpush1.bf16.msra.mxu0 0
    %141 = vmatprep.subr.bf16.mxu0 0
    %142 = vmatpush1.bf16.msra.mxu0 0
    %143 = vmatprep.subr.bf16.mxu0 0
    %144 = vmatpush1.bf16.msra.mxu0 0
    %145 = vmatprep.subr.bf16.mxu0 0
    %146 = vmatpush1.bf16.msra.mxu0 0
    %147 = vmatprep.subr.bf16.mxu0 0
    %148 = vmatpush1.bf16.msra.mxu0 0
    %149 = vmatprep.subr.bf16.mxu0 0
    %150 = vmatpush1.bf16.msra.mxu0 0
    %151 = vmatprep.subr.bf16.mxu0 0
    %152 = vmatpush1.bf16.msra.mxu0 0
    %153 = vmatprep.subr.bf16.mxu0 0
    %154 = vmatpush1.bf16.msra.mxu0 0
    %155 = vmatprep.subr.bf16.mxu0 0
    %156 = vmatpush1.bf16.msra.mxu0 0
    %157 = vmatprep.subr.bf16.mxu0 0
    %158 = vmatpush1.bf16.msra.mxu0 0
    %159 = vmatprep.subr.bf16.mxu0 0
    %160 = vmatpush1.bf16.msra.mxu0 0
    %161 = vmatprep.subr.bf16.mxu0 0
    %162 = vmatpush1.bf16.msra.mxu0 0
    %163 = vmatprep.subr.bf16.mxu0 0
    %164 = vmatpush1.bf16.msra.mxu0 0
    %165 = vmatprep.subr.bf16.mxu0 0
    %166 = vmatpush1.bf16.msra.mxu0 0
    %167 = vmatprep.mubr.bf16.mxu0 0
    %168 = vmatmul.mubr.bf16.gmra.mrb[0].mxu0 %v133
    %v169 = vpop.f32.mrb[0].mxu0
    %v170 = vadd.f32 %v115, %v169
    %v171 = vpop.f32.mrb[0].mxu0
    %v172 = vpop.f32.mrb[0].mxu0
    %v173 = vpop.f32.mrb[0].mxu0
    %174 = vdwg.mxu0
    %v175 = vld [vmem:[%s2] sm:$0x1]
    %v177 = vlaneseq
    %v178 = vshrl.u32 %v177, 7
    %v179 = vsub.s32 0, %v178
    %v180 = vrot.slane %v175, %v179
    %v182 = vadd.f32 %v170, %v180
    %v183 = vxor.u32 %v182, 2147483648
    %v184 = vmul.f32 %v183, 1.442695
    %v185 = vpow.pop %v184
    %v186 = vadd.f32 %v185, 1.0
    %v187 = vrcp.pop %v186
    %v188 = vmul.f32 1.0, %v187
    %190 = vrot.lane.b32.xlu0 %v182, 32
    %v191 = vpop.permute.xlu0 %190
    %v193 = vmul.f32 %v188, %v191
    %195 = vrot.lane.b32.xlu0 %v193, 64
    %v196 = vpop.permute.xlu0 %195
    %v198 = vadd.f32 %v182, %v196
    %v199 = vtanh.pop %v198
    %v200 = vsub.f32 1.0, %v188
    %202 = vrot.lane.b32.xlu0 %v199, 96
    %v203 = vpop.permute.xlu0 %202
    %v205 = vmul.f32 %v200, %v203
    %207 = vrot.lane.b32.xlu0 %v54, 32
    %v208 = vpop.permute.xlu0 %207
    %v210 = vmul.f32 %v188, %v208
    %v211 = vadd.f32 %v205, %v210
    %213 = vrot.lane.b32.xlu0 %v211, 96
    %v214 = vpop.permute.xlu0 %213
    %vm216 = vcmask 254976
    %217 = vst.msk [vmem:[#allocation2] sm:$0x3] %vm216, %v214
    %s218 = scalar_lea.vmem [#allocation2], 2
    %v219 = vld [vmem:[%s218] sm:$0x3]
    %221 = vrot.lane.b32.xlu0 %v219, 32
    %v222 = vpop.permute.xlu0 %221
    %v224 = vsel %vm76, %v214, %v222
    %v225 = vpack.c.bf16 %v224, %v224
    %v226 = vld [vmem:[#allocation3 + $0x20] sm:$0xf]
    %v227 = vld [vmem:[#allocation3 + $0x24] sm:$0xf]
    %v228 = vld [vmem:[#allocation3 + $0x28] sm:$0xf]
    %v229 = vld [vmem:[#allocation3 + $0x2c] sm:$0xf]
    %v230 = vld [vmem:[#allocation3 + $0x30] sm:$0xf]
    %v231 = vld [vmem:[#allocation3 + $0x34] sm:$0xf]
    %v232 = vld [vmem:[#allocation3 + $0x38] sm:$0xf]
    %v233 = vld [vmem:[#allocation3 + $0x3c] sm:$0xf]
    %s234 = scalar_lea.vmem %s2, 1
    %v235 = vld [vmem:[%s234] sm:$0x1]
    %v237 = vlaneseq
    %v238 = vshrl.u32 %v237, 7
    %v239 = vsub.s32 0, %v238
    %v240 = vrot.slane %v235, %v239
    %v250 = vunpack.c.l.b16 %v226
    %v251 = vunpack.c.l.b16 %v227
    %v252 = vunpack.c.l.b16 %v228
    %v253 = vunpack.c.l.b16 %v229
    %v254 = vunpack.c.l.b16 %v230
    %v255 = vunpack.c.l.b16 %v231
    %v256 = vunpack.c.l.b16 %v232
    %v257 = vunpack.c.l.b16 %v233
    %v258 = vpack.c.b16 %v251, %v250
    %v259 = vpack.c.b16 %v253, %v252
    %v260 = vpack.c.b16 %v255, %v254
    %v261 = vpack.c.b16 %v257, %v256
    %vm266 = vcmask 523264
    %v268 = vsel %vm266, %v225, 0
    %270 = vmatprep.subr.bf16.mxu0 0
    %271 = vmatpush1.bf16.msra.mxu0 %v258
    %272 = vmatprep.subr.bf16.mxu0 0
    %273 = vmatpush1.bf16.msra.mxu0 %v259
    %274 = vmatprep.subr.bf16.mxu0 0
    %275 = vmatpush1.bf16.msra.mxu0 %v260
    %276 = vmatprep.subr.bf16.mxu0 0
    %277 = vmatpush1.bf16.msra.mxu0 %v261
    %278 = vmatprep.subr.bf16.mxu0 0
    %279 = vmatpush1.bf16.msra.mxu0 0
    %280 = vmatprep.subr.bf16.mxu0 0
    %281 = vmatpush1.bf16.msra.mxu0 0
    %282 = vmatprep.subr.bf16.mxu0 0
    %283 = vmatpush1.bf16.msra.mxu0 0
    %284 = vmatprep.subr.bf16.mxu0 0
    %285 = vmatpush1.bf16.msra.mxu0 0
    %286 = vmatprep.subr.bf16.mxu0 0
    %287 = vmatpush1.bf16.msra.mxu0 0
    %288 = vmatprep.subr.bf16.mxu0 0
    %289 = vmatpush1.bf16.msra.mxu0 0
    %290 = vmatprep.subr.bf16.mxu0 0
    %291 = vmatpush1.bf16.msra.mxu0 0
    %292 = vmatprep.subr.bf16.mxu0 0
    %293 = vmatpush1.bf16.msra.mxu0 0
    %294 = vmatprep.subr.bf16.mxu0 0
    %295 = vmatpush1.bf16.msra.mxu0 0
    %296 = vmatprep.subr.bf16.mxu0 0
    %297 = vmatpush1.bf16.msra.mxu0 0
    %298 = vmatprep.subr.bf16.mxu0 0
    %299 = vmatpush1.bf16.msra.mxu0 0
    %300 = vmatprep.subr.bf16.mxu0 0
    %301 = vmatpush1.bf16.msra.mxu0 0
    %302 = vmatprep.mubr.bf16.mxu0 0
    %303 = vmatmul.mubr.bf16.gmra.mrb[0].mxu0 %v268
    %v304 = vpop.f32.mrb[0].mxu0
    %v305 = vadd.f32 %v240, %v304
    %v306 = vpop.f32.mrb[0].mxu0
    %v307 = vpop.f32.mrb[0].mxu0
    %v308 = vpop.f32.mrb[0].mxu0
    %309 = vdwg.mxu0
    %v310 = vxor.u32 %v305, 2147483648
    %v311 = vmul.f32 %v310, 1.442695
    %v312 = vpow.pop %v311
    %v313 = vadd.f32 %v312, 1.0
    %v314 = vrcp.pop %v313
    %v315 = vmul.f32 1.0, %v314
    %317 = vrot.lane.b32.xlu0 %v305, 32
    %v318 = vpop.permute.xlu0 %317
    %v320 = vmul.f32 %v315, %v318
    %322 = vrot.lane.b32.xlu0 %v320, 64
    %v323 = vpop.permute.xlu0 %322
    %v325 = vadd.f32 %v305, %v323
    %v326 = vtanh.pop %v325
    %v327 = vsub.f32 1.0, %v315
    %329 = vrot.lane.b32.xlu0 %v326, 96
    %v330 = vpop.permute.xlu0 %329
    %v332 = vmul.f32 %v327, %v330
    %v333 = vmul.f32 %v315, %v222
    %v334 = vadd.f32 %v332, %v333
    %336 = vrot.lane.b32.xlu0 %v334, 96
    %v337 = vpop.permute.xlu0 %336
    %339 = vst.msk [vmem:[%s218] sm:$0x3] %vm216, %v337
    %v340 = vld [vmem:[#allocation2] sm:$0x3]
    %v341 = vld [vmem:[#allocation2 + $0x2] sm:$0x3]
    %342 = vst.msk [vmem:[%s5] sm:$0x3] %vm216, %v340
    %343 = vst.msk [vmem:[%s5 + $0x2] sm:$0x3] %vm216, %v341
    %v344 = vpack.c.bf16 %v334, %v334
    %v345 = vld [vmem:[#allocation3 + $0x40] sm:$0xf]
    %v346 = vld [vmem:[#allocation3 + $0x44] sm:$0xf]
    %v347 = vld [vmem:[#allocation3 + $0x48] sm:$0xf]
    %v348 = vld [vmem:[#allocation3 + $0x4c] sm:$0xf]
    %s349 = scalar_lea.vmem %s2, 2
    %v350 = vld [vmem:[%s349] sm:$0x1]
    %v352 = vlaneseq
    %v353 = vshrl.u32 %v352, 7
    %v354 = vsub.s32 0, %v353
    %v355 = vrot.slane %v350, %v354
    %358 = vrot.lane.b32.xlu0 %v344, 96
    %v359 = vpop.permute.xlu0 %358
    %v364 = vunpack.c.l.b16 %v345
    %v365 = vunpack.c.l.b16 %v346
    %v366 = vunpack.c.l.b16 %v347
    %v367 = vunpack.c.l.b16 %v348
    %v368 = vpack.c.b16 %v365, %v364
    %v369 = vpack.c.b16 %v367, %v366
    %v373 = vsel %vm76, %v359, 0
    %375 = vmatprep.subr.bf16.mxu0 0
    %376 = vmatpush1.bf16.msra.mxu0 %v368
    %377 = vmatprep.subr.bf16.mxu0 0
    %378 = vmatpush1.bf16.msra.mxu0 %v369
    %379 = vmatprep.subr.bf16.mxu0 0
    %380 = vmatpush1.bf16.msra.mxu0 0
    %381 = vmatprep.subr.bf16.mxu0 0
    %382 = vmatpush1.bf16.msra.mxu0 0
    %383 = vmatprep.subr.bf16.mxu0 0
    %384 = vmatpush1.bf16.msra.mxu0 0
    %385 = vmatprep.subr.bf16.mxu0 0
    %386 = vmatpush1.bf16.msra.mxu0 0
    %387 = vmatprep.subr.bf16.mxu0 0
    %388 = vmatpush1.bf16.msra.mxu0 0
    %389 = vmatprep.subr.bf16.mxu0 0
    %390 = vmatpush1.bf16.msra.mxu0 0
    %391 = vmatprep.subr.bf16.mxu0 0
    %392 = vmatpush1.bf16.msra.mxu0 0
    %393 = vmatprep.subr.bf16.mxu0 0
    %394 = vmatpush1.bf16.msra.mxu0 0
    %395 = vmatprep.subr.bf16.mxu0 0
    %396 = vmatpush1.bf16.msra.mxu0 0
    %397 = vmatprep.subr.bf16.mxu0 0
    %398 = vmatpush1.bf16.msra.mxu0 0
    %399 = vmatprep.subr.bf16.mxu0 0
    %400 = vmatpush1.bf16.msra.mxu0 0
    %401 = vmatprep.subr.bf16.mxu0 0
    %402 = vmatpush1.bf16.msra.mxu0 0
    %403 = vmatprep.subr.bf16.mxu0 0
    %404 = vmatpush1.bf16.msra.mxu0 0
    %405 = vmatprep.subr.bf16.mxu0 0
    %406 = vmatpush1.bf16.msra.mxu0 0
    %407 = vmatprep.mubr.bf16.mxu0 0
    %408 = vmatmul.mubr.bf16.gmra.mrb[0].mxu0 %v373
    %v409 = vpop.f32.mrb[0].mxu0
    %v410 = vadd.f32 %v355, %v409
    %v411 = vpop.f32.mrb[0].mxu0
    %v412 = vpop.f32.mrb[0].mxu0
    %v413 = vpop.f32.mrb[0].mxu0
    %414 = vdwg.mxu0
    %415 = vst.msk [vmem:[#allocation6] sm:$0x3] %vm216, %v410
    // Predicated region
    $region26: #{rnn_forward.1} parent=1 // pred_check
      _
    $region27: #{rnn_forward.1} parent=1 // pred_check_branch
      %417 = sbr.rel (0) target = $region29
    $region28: #{rnn_forward.1} parent=1 // pred_region
      %s419 = ssub.s32 32, 32
      %420 = vsyncadd [#allocation5], %s419
      %s422 = sshll.u32 [#allocation6], 4
      %s423 = int_to_ptr.vmem [resolvable:$true] %s422
      %425 = dma.vmem_to_hbm [thread:$0]  %s423, 32, %s4, [#allocation5]
    $region29: #{rnn_forward.1} parent=1 // pred_fallthru
      _
    // Predicated region
    $region30: #{rnn_forward.1} parent=1 // pred_check
      _
    $region31: #{rnn_forward.1} parent=1 // pred_check_branch
      %427 = sbr.rel (0) target = $region33
    $region32: #{rnn_forward.1} parent=1 // pred_region
      _
    $region33: #{rnn_forward.1} parent=1 // pred_fallthru
      _
    // Predicated region
    $region34: #{rnn_forward.1} parent=1 // pred_check
      _
    $region35: #{rnn_forward.1} parent=1 // pred_check_branch
      %429 = sbr.rel (0) target = $region37
    $region36: #{rnn_forward.1} parent=1 // pred_region
      %430 = dma.done [#allocation5], 32
    $region37: #{rnn_forward.1} parent=1 // pred_fallthru
      _
    // Predicated region
    $region38: #{rnn_forward.1} parent=1 // pred_check
      _
    $region39: #{rnn_forward.1} parent=1 // pred_check_branch
      %432 = sbr.rel (0) target = $region41
    $region40: #{rnn_forward.1} parent=1 // pred_region
      _
    $region41: #{rnn_forward.1} parent=1 // pred_fallthru
      _
    %433 = vsyncpa [#allocation4], 1
    %434 = vsyncpa [#allocation5], 1

</llo_original>
